<compile_context>
chip_gen: v7x
topology: tpu7x:2x2x1
jax: 0.10.0
libtpu: 0.0.40
codegen_flags: <defaults>
</compile_context>

<pallas_src>
import functools

import jax
import jax.numpy as jnp
from jax.experimental import pallas as pl
from jax.experimental.pallas import tpu as pltpu


# ----------------------------------------------------------------------------
# Fused kernel: per M-tile, chain of (already Gumbel-blended) 1x1 convs + ReLU,
# detector-head matmul against a lane-padded weight, and the sum(logits^2)
# partial reduction.  Only an (8, 128) lane-dense partial-sum tile is stored.
#   refs = (x, w_0, ..., w_{L-1}, det_w_padded, out_partial)
# ----------------------------------------------------------------------------
def fused_supernet_kernel(x_ref, *refs):
    w_refs = refs[:-2]        # L blended layer weights, VMEM-resident
    det_ref = refs[-2]        # (Cout, 128) zero-padded head weight
    out_ref = refs[-1]        # (8, 128) per-tile partial sums

    feat = x_ref[...]                                        # bf16 (tm, Cin)
    for w_ref in w_refs:                                     # static unroll, L small
        h = jnp.dot(feat, w_ref[...], preferred_element_type=jnp.float32)
        feat = jnp.maximum(h, 0.0).astype(jnp.bfloat16)      # ReLU in f32, feed MXU bf16

    logits = jnp.dot(feat, det_ref[...],
                     preferred_element_type=jnp.float32)     # (tm, 128) f32, lane-dense
    partial = jnp.sum(logits * logits, axis=0, keepdims=True)  # (1, 128)
    # Broadcast over sublanes so the store is a full unmasked (8,128) tile; the
    # wrapper divides the final sum by 8 to compensate.
    out_ref[...] = jnp.broadcast_to(partial, out_ref.shape)


def fused_supernet_head(x2d_bf16, blended_ws, det_w_pad, *, tm=256):
    """x2d_bf16: (M, Cin) bf16 pixels (M % tm == 0); blended_ws: list of bf16
    (Ci, Co); det_w_pad: (Cout, 128) bf16.  Returns (M//tm * 8, 128) f32 partial
    sums of logits^2 (each tile's scalar replicated over 8 sublanes)."""
    M, Cin = x2d_bf16.shape
    assert M % tm == 0
    grid_m = M // tm

    in_specs = [pl.BlockSpec((tm, Cin), lambda i: (i, 0))]
    weights = list(blended_ws) + [det_w_pad]
    for w in weights:
        in_specs.append(pl.BlockSpec(w.shape, lambda i: (0, 0)))  # full, VMEM-resident

    return pl.pallas_call(
        fused_supernet_kernel,
        out_shape=jax.ShapeDtypeStruct((grid_m * 8, 128), jnp.float32),
        grid=(grid_m,),
        in_specs=in_specs,
        out_specs=pl.BlockSpec((8, 128), lambda i: (i, 0)),
        compiler_params=pltpu.CompilerParams(
            dimension_semantics=("parallel",)),
    )(x2d_bf16, *weights)


# ----------------------------------------------------------------------------
# Parameter construction (deterministic; shapes implied by __init__).
# ----------------------------------------------------------------------------
def init_params(key, *, cin, cout, n_layers, n_cands, det_out):
    keys = jax.random.split(key, n_layers + 3)
    conv_ws = []
    c_in = cin
    for l in range(n_layers):
        w = jax.random.normal(keys[l], (n_cands, c_in, cout), jnp.float32)
        conv_ws.append(w * (1.0 / jnp.sqrt(c_in)))
        c_in = cout
    theta = 1e-3 * jax.random.normal(keys[n_layers], (n_layers, n_cands),
                                     jnp.float32)            # FBNet arch params
    latency = jax.random.uniform(keys[n_layers + 1], (n_layers, n_cands),
                                 jnp.float32, 1.0, 5.0)       # speed_txt table
    det_w = jax.random.normal(keys[n_layers + 2], (cout, det_out),
                              jnp.float32) * (1.0 / jnp.sqrt(cout))
    return dict(conv_ws=conv_ws, theta=theta, latency=latency, det_w=det_w)


# ----------------------------------------------------------------------------
# Forward pass:  (detector_loss, latency_loss) = detection(img=x, temp=temp)
# ----------------------------------------------------------------------------
@functools.partial(jax.jit, static_argnames=())
def detection_forward(params, x_nchw, temp, gumbel_key):
    B, C, H, W = x_nchw.shape
    M = B * H * W
    # NCHW -> NHWC -> (B*H*W, C)   (channels on the 128-lane axis)
    x2d = jnp.transpose(x_nchw, (0, 2, 3, 1)).reshape(M, C)

    theta = params["theta"]          # (L, K)
    latency = params["latency"]      # (L, K)
    L, K = theta.shape

    # Gumbel-softmax architecture weights (deterministic noise from fixed key).
    gumbel = jax.random.gumbel(gumbel_key, theta.shape, jnp.float32)
    g_all = jax.nn.softmax((theta + gumbel) / temp, axis=-1)   # (L, K)

    # Latency loss: sum over layers of <gumbel weights, latency table> (tiny).
    latloss = jnp.sum(g_all * latency)

    # Fold the Gumbel mixture into the weights (exact: candidates are linear
    # before the shared ReLU), cast to bf16 for the MXU.
    blended_ws = [
        jnp.einsum("k,kio->io", g_all[l], params["conv_ws"][l]).astype(jnp.bfloat16)
        for l in range(L)
    ]

    # Zero-pad the detector head weight to 128 output lanes so the in-kernel
    # head matmul / loss reduction are lane-dense (padded lanes add exactly 0).
    det_w = params["det_w"]                                   # (Cout, DET_OUT)
    det_out = det_w.shape[1]
    lane_out = max(128, ((det_out + 127) // 128) * 128)
    det_w_pad = jnp.pad(det_w, ((0, 0), (0, lane_out - det_out))).astype(jnp.bfloat16)

    # Pad pixel rows to a tile multiple (zero rows contribute 0 to the sum).
    tm = 256
    pad_rows = (-M) % tm
    x2d_bf16 = x2d.astype(jnp.bfloat16)
    if pad_rows:
        x2d_bf16 = jnp.pad(x2d_bf16, ((0, pad_rows), (0, 0)))

    partials = fused_supernet_head(x2d_bf16, blended_ws, det_w_pad, tm=tm)

    # Each tile's partial sum is replicated over 8 sublanes -> divide by 8;
    # mean over the original (M, DET_OUT) logits.
    loss = jnp.sum(partials) / (8.0 * M * det_out)
    return loss, latloss


if __name__ == "__main__":
    B, Cin, H, W = 2, 16, 16, 16
    Cout, L, K, DET_OUT = 32, 3, 4, 8

    root = jax.random.PRNGKey(0)
    k_img, k_par, k_gum = jax.random.split(root, 3)

    x = jax.random.normal(k_img, (B, Cin, H, W), jnp.float32)  # NCHW like PyTorch
    temp = jnp.float32(5.0)                                    # FBNet temperature
    params = init_params(k_par, cin=Cin, cout=Cout, n_layers=L,
                         n_cands=K, det_out=DET_OUT)

    loss, latloss = detection_forward(params, x, temp, k_gum)
    jax.block_until_ready((loss, latloss))

    assert loss.shape == () and latloss.shape == ()
    assert jnp.isfinite(loss) and jnp.isfinite(latloss)
    print("KERNEL_OK")
</pallas_src>

<mosaic_0001>
module attributes {stable_mosaic.version = 11 : i64} {
  func.func @fused_supernet_kernel(%arg0: i32, %arg1: memref<256x16xbf16, #tpu.memory_space<vmem>>, %arg2: memref<16x32xbf16, #tpu.memory_space<vmem>>, %arg3: memref<32x32xbf16, #tpu.memory_space<vmem>>, %arg4: memref<32x32xbf16, #tpu.memory_space<vmem>>, %arg5: memref<32x128xbf16, #tpu.memory_space<vmem>>, %arg6: memref<8x128xf32, #tpu.memory_space<vmem>>) attributes {dimension_semantics = [#tpu.dimension_semantics<parallel>], iteration_bounds = array<i64: 2>, scalar_prefetch = 0 : i64, scratch_operands = 0 : i64, tpu.core_type = #tpu.core_type<tc>, window_params = [{transform_indices = @transform_0, window_bounds = array<i64: 256, 16>}, {pipeline_mode = #tpu.pipeline_mode<synchronous>, transform_indices = @transform_1, window_bounds = array<i64: 16, 32>}, {pipeline_mode = #tpu.pipeline_mode<synchronous>, transform_indices = @transform_2, window_bounds = array<i64: 32, 32>}, {pipeline_mode = #tpu.pipeline_mode<synchronous>, transform_indices = @transform_3, window_bounds = array<i64: 32, 32>}, {pipeline_mode = #tpu.pipeline_mode<synchronous>, transform_indices = @transform_4, window_bounds = array<i64: 32, 128>}, {transform_indices = @transform_5, window_bounds = array<i64: 8, 128>}]} {
    %c0 = arith.constant 0 : index
    %c0_0 = arith.constant 0 : index
    %0 = vector.load %arg1[%c0, %c0_0] : memref<256x16xbf16, #tpu.memory_space<vmem>>, vector<256x16xbf16>
    %c0_1 = arith.constant 0 : index
    %c0_2 = arith.constant 0 : index
    %1 = vector.load %arg2[%c0_1, %c0_2] : memref<16x32xbf16, #tpu.memory_space<vmem>>, vector<16x32xbf16>
    %cst = arith.constant dense<0.000000e+00> : vector<256x32xf32>
    %2 = tpu.matmul %0, %1, %cst {dimension_numbers = #tpu.dot_dimension_numbers<[1], [0], [0], [1], [0, 0, 1, 1], [], []>} : vector<256x16xbf16>, vector<16x32xbf16>, vector<256x32xf32> -> vector<256x32xf32>
    %cst_3 = arith.constant 0.000000e+00 : f32
    %3 = vector.broadcast %cst_3 : f32 to vector<256x32xf32>
    %4 = arith.maximumf %2, %3 : vector<256x32xf32>
    %5 = arith.truncf %4 : vector<256x32xf32> to vector<256x32xbf16>
    %c0_4 = arith.constant 0 : index
    %c0_5 = arith.constant 0 : index
    %6 = vector.load %arg3[%c0_4, %c0_5] : memref<32x32xbf16, #tpu.memory_space<vmem>>, vector<32x32xbf16>
    %cst_6 = arith.constant dense<0.000000e+00> : vector<256x32xf32>
    %7 = tpu.matmul %5, %6, %cst_6 {dimension_numbers = #tpu.dot_dimension_numbers<[1], [0], [0], [1], [0, 0, 1, 1], [], []>} : vector<256x32xbf16>, vector<32x32xbf16>, vector<256x32xf32> -> vector<256x32xf32>
    %cst_7 = arith.constant 0.000000e+00 : f32
    %8 = vector.broadcast %cst_7 : f32 to vector<256x32xf32>
    %9 = arith.maximumf %7, %8 : vector<256x32xf32>
    %10 = arith.truncf %9 : vector<256x32xf32> to vector<256x32xbf16>
    %c0_8 = arith.constant 0 : index
    %c0_9 = arith.constant 0 : index
    %11 = vector.load %arg4[%c0_8, %c0_9] : memref<32x32xbf16, #tpu.memory_space<vmem>>, vector<32x32xbf16>
    %cst_10 = arith.constant dense<0.000000e+00> : vector<256x32xf32>
    %12 = tpu.matmul %10, %11, %cst_10 {dimension_numbers = #tpu.dot_dimension_numbers<[1], [0], [0], [1], [0, 0, 1, 1], [], []>} : vector<256x32xbf16>, vector<32x32xbf16>, vector<256x32xf32> -> vector<256x32xf32>
    %cst_11 = arith.constant 0.000000e+00 : f32
    %13 = vector.broadcast %cst_11 : f32 to vector<256x32xf32>
    %14 = arith.maximumf %12, %13 : vector<256x32xf32>
    %15 = arith.truncf %14 : vector<256x32xf32> to vector<256x32xbf16>
    %c0_12 = arith.constant 0 : index
    %c0_13 = arith.constant 0 : index
    %16 = vector.load %arg5[%c0_12, %c0_13] : memref<32x128xbf16, #tpu.memory_space<vmem>>, vector<32x128xbf16>
    %cst_14 = arith.constant dense<0.000000e+00> : vector<256x128xf32>
    %17 = tpu.matmul %15, %16, %cst_14 {dimension_numbers = #tpu.dot_dimension_numbers<[1], [0], [0], [1], [0, 0, 1, 1], [], []>} : vector<256x32xbf16>, vector<32x128xbf16>, vector<256x128xf32> -> vector<256x128xf32>
    %18 = arith.mulf %17, %17 : vector<256x128xf32>
    %cst_15 = arith.constant dense<0.000000e+00> : vector<128xf32>
    %19 = vector.multi_reduction <add>, %18, %cst_15 [0] : vector<256x128xf32> to vector<128xf32>
    %20 = vector.shape_cast %19 : vector<128xf32> to vector<1x128xf32>
    %21 = vector.shape_cast %20 : vector<1x128xf32> to vector<1x128xf32>
    %22 = vector.broadcast %21 : vector<1x128xf32> to vector<8x128xf32>
    %c0_16 = arith.constant 0 : index
    %c0_17 = arith.constant 0 : index
    %23 = vector.load %arg6[%c0_16, %c0_17] : memref<8x128xf32, #tpu.memory_space<vmem>>, vector<8x128xf32>
    tpu.vector_store %arg6[%c0_16, %c0_17], %22 {strides = array<i32>} : memref<8x128xf32, #tpu.memory_space<vmem>>, vector<8x128xf32>,
    return
  }
  func.func @transform_0(%arg0: i32) -> (i32, i32) {
    %c0_i32 = arith.constant 0 : i32
    %c0_i32_0 = arith.constant 0 : i32
    return %arg0, %c0_i32 : i32, i32
  }
  func.func @transform_1(%arg0: i32) -> (i32, i32) {
    %c0_i32 = arith.constant 0 : i32
    %c0_i32_0 = arith.constant 0 : i32
    %c0_i32_1 = arith.constant 0 : i32
    return %c0_i32, %c0_i32_0 : i32, i32
  }
  func.func @transform_2(%arg0: i32) -> (i32, i32) {
    %c0_i32 = arith.constant 0 : i32
    %c0_i32_0 = arith.constant 0 : i32
    %c0_i32_1 = arith.constant 0 : i32
    return %c0_i32, %c0_i32_0 : i32, i32
  }
  func.func @transform_3(%arg0: i32) -> (i32, i32) {
    %c0_i32 = arith.constant 0 : i32
    %c0_i32_0 = arith.constant 0 : i32
    %c0_i32_1 = arith.constant 0 : i32
    return %c0_i32, %c0_i32_0 : i32, i32
  }
  func.func @transform_4(%arg0: i32) -> (i32, i32) {
    %c0_i32 = arith.constant 0 : i32
    %c0_i32_0 = arith.constant 0 : i32
    %c0_i32_1 = arith.constant 0 : i32
    return %c0_i32, %c0_i32_0 : i32, i32
  }
  func.func @transform_5(%arg0: i32) -> (i32, i32) {
    %c0_i32 = arith.constant 0 : i32
    %c0_i32_0 = arith.constant 0 : i32
    return %arg0, %c0_i32 : i32, i32
  }
}

</mosaic_0001>

<llo_original>
// kernel: detection_forward.1
$region0: #{detection_forward.1}
  #allocation0 [shape = 'u32[]', space=smem, size = 0x4, offset = 0x4, fixed_abs, tag = 'smem constant byte address 0x4 - core index']
  #allocation1 [shape = 'u32[144,128]{1,0:T(1,128)}', space=vmem, size = 0x12000, scoped, tag = 'internal scratch']
  %s0 = inlined_call_operand.vmem [shape: bf16[512,16], index: 0, kind: input, shape index: {}]
  %s1 = inlined_call_operand.vmem [shape: bf16[16,32], index: 1, kind: input, shape index: {}]
  %s2 = inlined_call_operand.vmem [shape: bf16[32,32], index: 2, kind: input, shape index: {}]
  %s3 = inlined_call_operand.vmem [shape: bf16[32,32], index: 3, kind: input, shape index: {}]
  %s4 = inlined_call_operand.vmem [shape: bf16[32,128], index: 4, kind: input, shape index: {}]
  %s5 = inlined_call_operand.vmem [shape: f32[16,128], index: 5, kind: output, shape index: {}]
  %s6 = sld [smem:[#allocation0]]
  $region53: #{detection_forward.1} parent=0
    _
  %s8 = ssub.s32 1, %s6
  %s9 = scalar_select 0, %s8, %s6
  loop: start=0, step=1, limit=4
  $region2: #{detection_forward.1} parent=0 // loop_pre_header
    _
  $region3: #{detection_forward.1} parent=0 // loop_header
    %s11 = sphi 0, %s15
    %p12 = scmp.ge.s32.totalorder %s11, 4
    %s21 = sphi 0, %s23
    %s24 = sphi 0, %s21
    %s25 = sphi 0, %s24
    %s41 = sphi 0, %s25
    %s45 = sphi 0, %s45
    %s47 = sphi 0, %s45
    %s48 = sphi 0, %s47
    %s62 = sphi 0, %s48
    %s66 = sphi 0, %s66
    %s68 = sphi 0, %s66
    %s69 = sphi 0, %s68
    %s83 = sphi 0, %s69
    %s87 = sphi 0, %s87
    %s89 = sphi 0, %s87
    %s90 = sphi 0, %s89
    %s104 = sphi 0, %s90
    %s108 = sphi 0, %s108
    %s110 = sphi 0, %s108
    %s111 = sphi 0, %s110
    %s125 = sphi 0, %s111
    %s131 = sphi 0, %s133
    %s134 = sphi 0, %s131
    %s135 = sphi 0, %s134
    %s151 = sphi 0, %s135
  $region4: #{detection_forward.1} parent=0 // loop_header_branch
    %14 = sbr.rel (%p12) target = $region8
  $region5: #{detection_forward.1} parent=0 // loop_body
    %s16 = ssub.s32 %s11, 1
    %s17 = ssub.s32 %s11, 2
    %s18 = sadd.s32 %s11, 1
    %s19 = ssub.s32 %s11, %s18
    %p20 = scmp.eq.s32.totalorder %s19, 0
    %s22 = sadd.s32 %s21, 1
    %s23 = scalar_select %p20, %s21, %s22
    %p26 = pneg %p20
    %p27 = scmp.eq.s32.totalorder %s11, 1
    %p28 = por %p26, %p27
    %p29 = scmp.ne.s32.totalorder %s21, %s24
    %p30 = scmp.eq.s32.totalorder %s11, 0
    %p31 = por %p29, %p30
    %p32 = scmp.ne.s32.totalorder %s21, %s24
    %p33 = scmp.eq.s32.totalorder %s16, 1
    %p34 = por %p32, %p33
    %p35 = scmp.ne.s32.totalorder %s24, %s25
    %p36 = scmp.eq.s32.totalorder %s16, 0
    %p37 = por %p35, %p36
    %p38 = scmp.ne.s32.totalorder %s24, %s25
    %p39 = scmp.eq.s32.totalorder %s17, 1
    %p40 = por %p38, %p39
    %p42 = scmp.ne.s32.totalorder %s25, %s41
    %p43 = scmp.eq.s32.totalorder %s17, 0
    %p44 = por %p42, %p43
    %s46 = sadd.s32 %s45, 1
    %p49 = scmp.eq.s32.totalorder %s11, 1
    %p50 = scmp.ne.s32.totalorder %s45, %s47
    %p51 = scmp.eq.s32.totalorder %s11, 0
    %p52 = por %p50, %p51
    %p53 = scmp.ne.s32.totalorder %s45, %s47
    %p54 = scmp.eq.s32.totalorder %s16, 1
    %p55 = por %p53, %p54
    %p56 = scmp.ne.s32.totalorder %s47, %s48
    %p57 = scmp.eq.s32.totalorder %s16, 0
    %p58 = por %p56, %p57
    %p59 = scmp.ne.s32.totalorder %s47, %s48
    %p60 = scmp.eq.s32.totalorder %s17, 1
    %p61 = por %p59, %p60
    %p63 = scmp.ne.s32.totalorder %s48, %s62
    %p64 = scmp.eq.s32.totalorder %s17, 0
    %p65 = por %p63, %p64
    %s67 = sadd.s32 %s66, 1
    %p70 = scmp.eq.s32.totalorder %s11, 1
    %p71 = scmp.ne.s32.totalorder %s66, %s68
    %p72 = scmp.eq.s32.totalorder %s11, 0
    %p73 = por %p71, %p72
    %p74 = scmp.ne.s32.totalorder %s66, %s68
    %p75 = scmp.eq.s32.totalorder %s16, 1
    %p76 = por %p74, %p75
    %p77 = scmp.ne.s32.totalorder %s68, %s69
    %p78 = scmp.eq.s32.totalorder %s16, 0
    %p79 = por %p77, %p78
    %p80 = scmp.ne.s32.totalorder %s68, %s69
    %p81 = scmp.eq.s32.totalorder %s17, 1
    %p82 = por %p80, %p81
    %p84 = scmp.ne.s32.totalorder %s69, %s83
    %p85 = scmp.eq.s32.totalorder %s17, 0
    %p86 = por %p84, %p85
    %s88 = sadd.s32 %s87, 1
    %p91 = scmp.eq.s32.totalorder %s11, 1
    %p92 = scmp.ne.s32.totalorder %s87, %s89
    %p93 = scmp.eq.s32.totalorder %s11, 0
    %p94 = por %p92, %p93
    %p95 = scmp.ne.s32.totalorder %s87, %s89
    %p96 = scmp.eq.s32.totalorder %s16, 1
    %p97 = por %p95, %p96
    %p98 = scmp.ne.s32.totalorder %s89, %s90
    %p99 = scmp.eq.s32.totalorder %s16, 0
    %p100 = por %p98, %p99
    %p101 = scmp.ne.s32.totalorder %s89, %s90
    %p102 = scmp.eq.s32.totalorder %s17, 1
    %p103 = por %p101, %p102
    %p105 = scmp.ne.s32.totalorder %s90, %s104
    %p106 = scmp.eq.s32.totalorder %s17, 0
    %p107 = por %p105, %p106
    %s109 = sadd.s32 %s108, 1
    %p112 = scmp.eq.s32.totalorder %s11, 1
    %p113 = scmp.ne.s32.totalorder %s108, %s110
    %p114 = scmp.eq.s32.totalorder %s11, 0
    %p115 = por %p113, %p114
    %p116 = scmp.ne.s32.totalorder %s108, %s110
    %p117 = scmp.eq.s32.totalorder %s16, 1
    %p118 = por %p116, %p117
    %p119 = scmp.ne.s32.totalorder %s110, %s111
    %p120 = scmp.eq.s32.totalorder %s16, 0
    %p121 = por %p119, %p120
    %p122 = scmp.ne.s32.totalorder %s110, %s111
    %p123 = scmp.eq.s32.totalorder %s17, 1
    %p124 = por %p122, %p123
    %p126 = scmp.ne.s32.totalorder %s111, %s125
    %p127 = scmp.eq.s32.totalorder %s17, 0
    %p128 = por %p126, %p127
    %s129 = ssub.s32 %s11, %s18
    %p130 = scmp.eq.s32.totalorder %s129, 0
    %s132 = sadd.s32 %s131, 1
    %s133 = scalar_select %p130, %s131, %s132
    %p136 = pneg %p130
    %p137 = scmp.eq.s32.totalorder %s11, 1
    %p138 = por %p136, %p137
    %p139 = scmp.ne.s32.totalorder %s131, %s134
    %p140 = scmp.eq.s32.totalorder %s11, 0
    %p141 = por %p139, %p140
    %p142 = scmp.ne.s32.totalorder %s131, %s134
    %p143 = scmp.eq.s32.totalorder %s16, 1
    %p144 = por %p142, %p143
    %p145 = scmp.ne.s32.totalorder %s134, %s135
    %p146 = scmp.eq.s32.totalorder %s16, 0
    %p147 = por %p145, %p146
    %p148 = scmp.ne.s32.totalorder %s134, %s135
    %p149 = scmp.eq.s32.totalorder %s17, 1
    %p150 = por %p148, %p149
    %p152 = scmp.ne.s32.totalorder %s135, %s151
    %p153 = scmp.eq.s32.totalorder %s17, 0
    %p154 = por %p152, %p153
    %p155 = scmp.le.s32.totalorder 1, %s11
    %p156 = scmp.lt.s32.totalorder %s11, 3
    %p157 = pnand %p155, %p156
    %p158 = pneg %p157
    // Predicated region
    $region9: #{detection_forward.1} parent=5 // pred_check
      _
    $region10: #{detection_forward.1} parent=5 // pred_check_branch
      %160 = sbr.rel (%p157) target = $region12
    $region11: #{detection_forward.1} parent=5 // pred_region
      %s161 = ssub.s32 %s11, 1
      // Predicated region
      $region13: #{detection_forward.1} parent=11 // pred_check
        %p162 = pneg %p58
      $region14: #{detection_forward.1} parent=11 // pred_check_branch
        %164 = sbr.rel (%p162) target = $region16
      $region15: #{detection_forward.1} parent=11 // pred_region
        _
      $region16: #{detection_forward.1} parent=11 // pred_fallthru
        _
      // Predicated region
      $region17: #{detection_forward.1} parent=11 // pred_check
        %p165 = pneg %p79
      $region18: #{detection_forward.1} parent=11 // pred_check_branch
        %167 = sbr.rel (%p165) target = $region20
      $region19: #{detection_forward.1} parent=11 // pred_region
        _
      $region20: #{detection_forward.1} parent=11 // pred_fallthru
        _
      // Predicated region
      $region21: #{detection_forward.1} parent=11 // pred_check
        %p168 = pneg %p100
      $region22: #{detection_forward.1} parent=11 // pred_check_branch
        %170 = sbr.rel (%p168) target = $region24
      $region23: #{detection_forward.1} parent=11 // pred_region
        _
      $region24: #{detection_forward.1} parent=11 // pred_fallthru
        _
      // Predicated region
      $region25: #{detection_forward.1} parent=11 // pred_check
        %p171 = pneg %p121
      $region26: #{detection_forward.1} parent=11 // pred_check_branch
        %173 = sbr.rel (%p171) target = $region28
      $region27: #{detection_forward.1} parent=11 // pred_region
        _
      $region28: #{detection_forward.1} parent=11 // pred_fallthru
        _
    $region12: #{detection_forward.1} parent=5 // pred_fallthru
      _
    %p174 = scmp.lt.s32.totalorder %s11, 2
    // Predicated region
    $region29: #{detection_forward.1} parent=5 // pred_check
      %p175 = pneg %p174
    $region30: #{detection_forward.1} parent=5 // pred_check_branch
      %177 = sbr.rel (%p175) target = $region32
    $region31: #{detection_forward.1} parent=5 // pred_region
      // Predicated region
      $region33: #{detection_forward.1} parent=31 // pred_check
        %p178 = pneg %p31
      $region34: #{detection_forward.1} parent=31 // pred_check_branch
        %180 = sbr.rel (%p178) target = $region36
      $region35: #{detection_forward.1} parent=31 // pred_region
        %s181 = smul.u32 32, %s11
        %p182 = scmp.lt.s32.totalorder %s181, 63
        %s183 = scalar_select %p182, %s181, 63
        %s184 = smul.addr %s183, 4
        %s185 = scalar_lea.vmem %s0, %s184
        %s186 = smul.u32 32, %s11
      $region36: #{detection_forward.1} parent=31 // pred_fallthru
        _
    $region32: #{detection_forward.1} parent=5 // pred_fallthru
      _
    %p187 = scmp.le.s32.totalorder 1, %s11
    %p188 = scmp.lt.s32.totalorder %s11, 3
    %p189 = pnand %p187, %p188
    %p190 = pneg %p189
    // Predicated region
    $region37: #{detection_forward.1} parent=5 // pred_check
      _
    $region38: #{detection_forward.1} parent=5 // pred_check_branch
      %192 = sbr.rel (%p189) target = $region40
    $region39: #{detection_forward.1} parent=5 // pred_region
      %s193 = ssub.s32 %s11, 1
      %s194 = smul.u32 32, %s16
      %p195 = scmp.lt.s32.totalorder %s194, 63
      %s196 = scalar_select %p195, %s194, 63
      %s197 = smul.addr %s196, 4
      %s198 = scalar_lea.vmem %s0, %s197
      %p199 = pneg %p37
      %p200 = pneg %p34
      %p201 = pneg %p58
      %p202 = pneg %p55
      %p203 = pneg %p79
      %p204 = pneg %p76
      %p205 = pneg %p100
      %p206 = pneg %p97
      %p207 = pneg %p121
      %p208 = pneg %p118
      %p209 = pneg %p147
      %p210 = pneg %p144
      %p211 = scmp.lt.s32.totalorder %s16, 1
      %s212 = scalar_select %p211, %s16, 1
      %s213 = smul.addr %s212, 8
      %s214 = scalar_lea.vmem %s5, %s213
      %s215 = smul.u32 32, %s16
      %p216 = scmp.lt.s32.totalorder %s215, 63
      %s217 = scalar_select %p216, %s215, 63
      %s218 = smul.addr %s217, 4
      %s219 = scalar_lea.vmem %s0, %s218
      %s220 = smul.u32 32, %s16
      %p221 = scmp.lt.s32.totalorder %s16, 1
      %s222 = scalar_select %p221, %s16, 1
      %s223 = smul.addr %s222, 8
      %s224 = scalar_lea.vmem %s5, %s223
      %v226 = vld [vmem:[%s219] sm:$0xf]
      %v227 = vld [vmem:[%s219 + $0x4] sm:$0xf]
      %v228 = vld [vmem:[%s219 + $0x8] sm:$0xf]
      %v229 = vld [vmem:[%s219 + $0xc] sm:$0xf]
      %v230 = vld [vmem:[%s219 + $0x10] sm:$0xf]
      %v231 = vld [vmem:[%s219 + $0x14] sm:$0xf]
      %v232 = vld [vmem:[%s219 + $0x18] sm:$0xf]
      %v233 = vld [vmem:[%s219 + $0x1c] sm:$0xf]
      %v234 = vld [vmem:[%s219 + $0x20] sm:$0xf]
      %v235 = vld [vmem:[%s219 + $0x24] sm:$0xf]
      %v236 = vld [vmem:[%s219 + $0x28] sm:$0xf]
      %v237 = vld [vmem:[%s219 + $0x2c] sm:$0xf]
      %v238 = vld [vmem:[%s219 + $0x30] sm:$0xf]
      %v239 = vld [vmem:[%s219 + $0x34] sm:$0xf]
      %v240 = vld [vmem:[%s219 + $0x38] sm:$0xf]
      %v241 = vld [vmem:[%s219 + $0x3c] sm:$0xf]
      %v242 = vld [vmem:[%s219 + $0x40] sm:$0xf]
      %v243 = vld [vmem:[%s219 + $0x44] sm:$0xf]
      %v244 = vld [vmem:[%s219 + $0x48] sm:$0xf]
      %v245 = vld [vmem:[%s219 + $0x4c] sm:$0xf]
      %v246 = vld [vmem:[%s219 + $0x50] sm:$0xf]
      %v247 = vld [vmem:[%s219 + $0x54] sm:$0xf]
      %v248 = vld [vmem:[%s219 + $0x58] sm:$0xf]
      %v249 = vld [vmem:[%s219 + $0x5c] sm:$0xf]
      %v250 = vld [vmem:[%s219 + $0x60] sm:$0xf]
      %v251 = vld [vmem:[%s219 + $0x64] sm:$0xf]
      %v252 = vld [vmem:[%s219 + $0x68] sm:$0xf]
      %v253 = vld [vmem:[%s219 + $0x6c] sm:$0xf]
      %v254 = vld [vmem:[%s219 + $0x70] sm:$0xf]
      %v255 = vld [vmem:[%s219 + $0x74] sm:$0xf]
      %v256 = vld [vmem:[%s219 + $0x78] sm:$0xf]
      %v257 = vld [vmem:[%s219 + $0x7c] sm:$0xf]
      %v258 = vld [vmem:[%s1] sm:$0xf]
      %v259 = vld [vmem:[%s1 + $0x4] sm:$0xf]
      %v292 = vunpack.c.l.b16 %v226
      %v293 = vunpack.c.l.b16 %v227
      %v294 = vunpack.c.l.b16 %v228
      %v295 = vunpack.c.l.b16 %v229
      %v296 = vunpack.c.l.b16 %v230
      %v297 = vunpack.c.l.b16 %v231
      %v298 = vunpack.c.l.b16 %v232
      %v299 = vunpack.c.l.b16 %v233
      %v300 = vunpack.c.l.b16 %v234
      %v301 = vunpack.c.l.b16 %v235
      %v302 = vunpack.c.l.b16 %v236
      %v303 = vunpack.c.l.b16 %v237
      %v304 = vunpack.c.l.b16 %v238
      %v305 = vunpack.c.l.b16 %v239
      %v306 = vunpack.c.l.b16 %v240
      %v307 = vunpack.c.l.b16 %v241
      %v308 = vunpack.c.l.b16 %v242
      %v309 = vunpack.c.l.b16 %v243
      %v310 = vunpack.c.l.b16 %v244
      %v311 = vunpack.c.l.b16 %v245
      %v312 = vunpack.c.l.b16 %v246
      %v313 = vunpack.c.l.b16 %v247
      %v314 = vunpack.c.l.b16 %v248
      %v315 = vunpack.c.l.b16 %v249
      %v316 = vunpack.c.l.b16 %v250
      %v317 = vunpack.c.l.b16 %v251
      %v318 = vunpack.c.l.b16 %v252
      %v319 = vunpack.c.l.b16 %v253
      %v320 = vunpack.c.l.b16 %v254
      %v321 = vunpack.c.l.b16 %v255
      %v322 = vunpack.c.l.b16 %v256
      %v323 = vunpack.c.l.b16 %v257
      %v324 = vpack.c.b16 %v293, %v292
      %v325 = vpack.c.b16 %v295, %v294
      %v326 = vpack.c.b16 %v297, %v296
      %v327 = vpack.c.b16 %v299, %v298
      %v328 = vpack.c.b16 %v301, %v300
      %v329 = vpack.c.b16 %v303, %v302
      %v330 = vpack.c.b16 %v305, %v304
      %v331 = vpack.c.b16 %v307, %v306
      %v332 = vpack.c.b16 %v309, %v308
      %v333 = vpack.c.b16 %v311, %v310
      %v334 = vpack.c.b16 %v313, %v312
      %v335 = vpack.c.b16 %v315, %v314
      %v336 = vpack.c.b16 %v317, %v316
      %v337 = vpack.c.b16 %v319, %v318
      %v338 = vpack.c.b16 %v321, %v320
      %v339 = vpack.c.b16 %v323, %v322
      %v342 = vunpack.c.l.b16 %v258
      %v343 = vunpack.c.l.b16 %v259
      %v344 = vpack.c.b16 %v343, %v342
      %vm346 = vcmask 130048
      %v348 = vsel %vm346, %v324, 0
      %v351 = vsel %vm346, %v325, 0
      %v354 = vsel %vm346, %v326, 0
      %v357 = vsel %vm346, %v327, 0
      %v360 = vsel %vm346, %v328, 0
      %v363 = vsel %vm346, %v329, 0
      %v366 = vsel %vm346, %v330, 0
      %v369 = vsel %vm346, %v331, 0
      %v372 = vsel %vm346, %v332, 0
      %v375 = vsel %vm346, %v333, 0
      %v378 = vsel %vm346, %v334, 0
      %v381 = vsel %vm346, %v335, 0
      %v384 = vsel %vm346, %v336, 0
      %v387 = vsel %vm346, %v337, 0
      %v390 = vsel %vm346, %v338, 0
      %v393 = vsel %vm346, %v339, 0
      %395 = vmatprep.subr.bf16.mxu0 0
      %396 = vmatpush1.bf16.msra.mxu0 %v344
      %397 = vmatprep.subr.bf16.mxu0 0
      %398 = vmatpush1.bf16.msra.mxu0 0
      %399 = vmatprep.subr.bf16.mxu0 0
      %400 = vmatpush1.bf16.msra.mxu0 0
      %401 = vmatprep.subr.bf16.mxu0 0
      %402 = vmatpush1.bf16.msra.mxu0 0
      %403 = vmatprep.subr.bf16.mxu0 0
      %404 = vmatpush1.bf16.msra.mxu0 0
      %405 = vmatprep.subr.bf16.mxu0 0
      %406 = vmatpush1.bf16.msra.mxu0 0
      %407 = vmatprep.subr.bf16.mxu0 0
      %408 = vmatpush1.bf16.msra.mxu0 0
      %409 = vmatprep.subr.bf16.mxu0 0
      %410 = vmatpush1.bf16.msra.mxu0 0
      %411 = vmatprep.subr.bf16.mxu0 0
      %412 = vmatpush1.bf16.msra.mxu0 0
      %413 = vmatprep.subr.bf16.mxu0 0
      %414 = vmatpush1.bf16.msra.mxu0 0
      %415 = vmatprep.subr.bf16.mxu0 0
      %416 = vmatpush1.bf16.msra.mxu0 0
      %417 = vmatprep.subr.bf16.mxu0 0
      %418 = vmatpush1.bf16.msra.mxu0 0
      %419 = vmatprep.subr.bf16.mxu0 0
      %420 = vmatpush1.bf16.msra.mxu0 0
      %421 = vmatprep.subr.bf16.mxu0 0
      %422 = vmatpush1.bf16.msra.mxu0 0
      %423 = vmatprep.subr.bf16.mxu0 0
      %424 = vmatpush1.bf16.msra.mxu0 0
      %425 = vmatprep.subr.bf16.mxu0 0
      %426 = vmatpush1.bf16.msra.mxu0 0
      %427 = vmatprep.mubr.bf16.mxu0 0
      %428 = vmatmul.mubr.bf16.gmra.mrb[0].mxu0 %v348
      %v429 = vpop.f32.mrb[0].mxu0
      %v430 = vadd.f32 0.0, %v429
      %v431 = vpop.f32.mrb[0].mxu0
      %v432 = vpop.f32.mrb[0].mxu0
      %v433 = vadd.f32 0.0, %v432
      %v434 = vpop.f32.mrb[0].mxu0
      %435 = vmatprep.mubr.bf16.mxu0 0
      %436 = vmatmul.mubr.bf16.gmra.mrb[0].mxu0 %v351
      %v437 = vpop.f32.mrb[0].mxu0
      %v438 = vadd.f32 0.0, %v437
      %v439 = vpop.f32.mrb[0].mxu0
      %v440 = vpop.f32.mrb[0].mxu0
      %v441 = vadd.f32 0.0, %v440
      %v442 = vpop.f32.mrb[0].mxu0
      %443 = vmatprep.mubr.bf16.mxu0 0
      %444 = vmatmul.mubr.bf16.gmra.mrb[0].mxu0 %v354
      %v445 = vpop.f32.mrb[0].mxu0
      %v446 = vadd.f32 0.0, %v445
      %v447 = vpop.f32.mrb[0].mxu0
      %v448 = vpop.f32.mrb[0].mxu0
      %v449 = vadd.f32 0.0, %v448
      %v450 = vpop.f32.mrb[0].mxu0
      %451 = vmatprep.mubr.bf16.mxu0 0
      %452 = vmatmul.mubr.bf16.gmra.mrb[0].mxu0 %v357
      %v453 = vpop.f32.mrb[0].mxu0
      %v454 = vadd.f32 0.0, %v453
      %v455 = vpop.f32.mrb[0].mxu0
      %v456 = vpop.f32.mrb[0].mxu0
      %v457 = vadd.f32 0.0, %v456
      %v458 = vpop.f32.mrb[0].mxu0
      %459 = vmatprep.mubr.bf16.mxu0 0
      %460 = vmatmul.mubr.bf16.gmra.mrb[0].mxu0 %v360
      %v461 = vpop.f32.mrb[0].mxu0
      %v462 = vadd.f32 0.0, %v461
      %v463 = vpop.f32.mrb[0].mxu0
      %v464 = vpop.f32.mrb[0].mxu0
      %v465 = vadd.f32 0.0, %v464
      %v466 = vpop.f32.mrb[0].mxu0
      %467 = vmatprep.mubr.bf16.mxu0 0
      %468 = vmatmul.mubr.bf16.gmra.mrb[0].mxu0 %v363
      %v469 = vpop.f32.mrb[0].mxu0
      %v470 = vadd.f32 0.0, %v469
      %v471 = vpop.f32.mrb[0].mxu0
      %v472 = vpop.f32.mrb[0].mxu0
      %v473 = vadd.f32 0.0, %v472
      %v474 = vpop.f32.mrb[0].mxu0
      %475 = vmatprep.mubr.bf16.mxu0 0
      %476 = vmatmul.mubr.bf16.gmra.mrb[0].mxu0 %v366
      %v477 = vpop.f32.mrb[0].mxu0
      %v478 = vadd.f32 0.0, %v477
      %v479 = vpop.f32.mrb[0].mxu0
      %v480 = vpop.f32.mrb[0].mxu0
      %v481 = vadd.f32 0.0, %v480
      %v482 = vpop.f32.mrb[0].mxu0
      %483 = vmatprep.mubr.bf16.mxu0 0
      %484 = vmatmul.mubr.bf16.gmra.mrb[0].mxu0 %v369
      %v485 = vpop.f32.mrb[0].mxu0
      %v486 = vadd.f32 0.0, %v485
      %v487 = vpop.f32.mrb[0].mxu0
      %v488 = vpop.f32.mrb[0].mxu0
      %v489 = vadd.f32 0.0, %v488
      %v490 = vpop.f32.mrb[0].mxu0
      %491 = vmatprep.mubr.bf16.mxu0 0
      %492 = vmatmul.mubr.bf16.gmra.mrb[0].mxu0 %v372
      %v493 = vpop.f32.mrb[0].mxu0
      %v494 = vadd.f32 0.0, %v493
      %v495 = vpop.f32.mrb[0].mxu0
      %v496 = vpop.f32.mrb[0].mxu0
      %v497 = vadd.f32 0.0, %v496
      %v498 = vpop.f32.mrb[0].mxu0
      %499 = vmatprep.mubr.bf16.mxu0 0
      %500 = vmatmul.mubr.bf16.gmra.mrb[0].mxu0 %v375
      %v501 = vpop.f32.mrb[0].mxu0
      %v502 = vadd.f32 0.0, %v501
      %v503 = vpop.f32.mrb[0].mxu0
      %v504 = vpop.f32.mrb[0].mxu0
      %v505 = vadd.f32 0.0, %v504
      %v506 = vpop.f32.mrb[0].mxu0
      %507 = vmatprep.mubr.bf16.mxu0 0
      %508 = vmatmul.mubr.bf16.gmra.mrb[0].mxu0 %v378
      %v509 = vpop.f32.mrb[0].mxu0
      %v510 = vadd.f32 0.0, %v509
      %v511 = vpop.f32.mrb[0].mxu0
      %v512 = vpop.f32.mrb[0].mxu0
      %v513 = vadd.f32 0.0, %v512
      %v514 = vpop.f32.mrb[0].mxu0
      %515 = vmatprep.mubr.bf16.mxu0 0
      %516 = vmatmul.mubr.bf16.gmra.mrb[0].mxu0 %v381
      %v517 = vpop.f32.mrb[0].mxu0
      %v518 = vadd.f32 0.0, %v517
      %v519 = vpop.f32.mrb[0].mxu0
      %v520 = vpop.f32.mrb[0].mxu0
      %v521 = vadd.f32 0.0, %v520
      %v522 = vpop.f32.mrb[0].mxu0
      %523 = vmatprep.mubr.bf16.mxu0 0
      %524 = vmatmul.mubr.bf16.gmra.mrb[0].mxu0 %v384
      %v525 = vpop.f32.mrb[0].mxu0
      %v526 = vadd.f32 0.0, %v525
      %v527 = vpop.f32.mrb[0].mxu0
      %v528 = vpop.f32.mrb[0].mxu0
      %v529 = vadd.f32 0.0, %v528
      %v530 = vpop.f32.mrb[0].mxu0
      %531 = vmatprep.mubr.bf16.mxu0 0
      %532 = vmatmul.mubr.bf16.gmra.mrb[0].mxu0 %v387
      %v533 = vpop.f32.mrb[0].mxu0
      %v534 = vadd.f32 0.0, %v533
      %v535 = vpop.f32.mrb[0].mxu0
      %v536 = vpop.f32.mrb[0].mxu0
      %v537 = vadd.f32 0.0, %v536
      %v538 = vpop.f32.mrb[0].mxu0
      %539 = vmatprep.mubr.bf16.mxu0 0
      %540 = vmatmul.mubr.bf16.gmra.mrb[0].mxu0 %v390
      %v541 = vpop.f32.mrb[0].mxu0
      %v542 = vadd.f32 0.0, %v541
      %v543 = vpop.f32.mrb[0].mxu0
      %v544 = vpop.f32.mrb[0].mxu0
      %v545 = vadd.f32 0.0, %v544
      %v546 = vpop.f32.mrb[0].mxu0
      %547 = vmatprep.mubr.bf16.mxu0 0
      %548 = vmatmul.mubr.bf16.gmra.mrb[0].mxu0 %v393
      %v549 = vpop.f32.mrb[0].mxu0
      %v550 = vadd.f32 0.0, %v549
      %v551 = vpop.f32.mrb[0].mxu0
      %v552 = vpop.f32.mrb[0].mxu0
      %v553 = vadd.f32 0.0, %v552
      %v554 = vpop.f32.mrb[0].mxu0
      %555 = vdwg.mxu0
      %v556 = vmax.f32 %v430, 0.0
      %v557 = vmax.f32 %v433, 0.0
      %v558 = vmax.f32 %v438, 0.0
      %v559 = vmax.f32 %v441, 0.0
      %v560 = vmax.f32 %v446, 0.0
      %v561 = vmax.f32 %v449, 0.0
      %v562 = vmax.f32 %v454, 0.0
      %v563 = vmax.f32 %v457, 0.0
      %v564 = vmax.f32 %v462, 0.0
      %v565 = vmax.f32 %v465, 0.0
      %v566 = vmax.f32 %v470, 0.0
      %v567 = vmax.f32 %v473, 0.0
      %v568 = vmax.f32 %v478, 0.0
      %v569 = vmax.f32 %v481, 0.0
      %v570 = vmax.f32 %v486, 0.0
      %v571 = vmax.f32 %v489, 0.0
      %v572 = vmax.f32 %v494, 0.0
      %v573 = vmax.f32 %v497, 0.0
      %v574 = vmax.f32 %v502, 0.0
      %v575 = vmax.f32 %v505, 0.0
      %v576 = vmax.f32 %v510, 0.0
      %v577 = vmax.f32 %v513, 0.0
      %v578 = vmax.f32 %v518, 0.0
      %v579 = vmax.f32 %v521, 0.0
      %v580 = vmax.f32 %v526, 0.0
      %v581 = vmax.f32 %v529, 0.0
      %v582 = vmax.f32 %v534, 0.0
      %v583 = vmax.f32 %v537, 0.0
      %v584 = vmax.f32 %v542, 0.0
      %v585 = vmax.f32 %v545, 0.0
      %v586 = vmax.f32 %v550, 0.0
      %v587 = vmax.f32 %v553, 0.0
      %v588 = vpack.c.bf16 %v557, %v556
      %v589 = vpack.c.bf16 %v559, %v558
      %v590 = vpack.c.bf16 %v561, %v560
      %v591 = vpack.c.bf16 %v563, %v562
      %v592 = vpack.c.bf16 %v565, %v564
      %v593 = vpack.c.bf16 %v567, %v566
      %v594 = vpack.c.bf16 %v569, %v568
      %v595 = vpack.c.bf16 %v571, %v570
      %v596 = vpack.c.bf16 %v573, %v572
      %v597 = vpack.c.bf16 %v575, %v574
      %v598 = vpack.c.bf16 %v577, %v576
      %v599 = vpack.c.bf16 %v579, %v578
      %v600 = vpack.c.bf16 %v581, %v580
      %v601 = vpack.c.bf16 %v583, %v582
      %v602 = vpack.c.bf16 %v585, %v584
      %v603 = vpack.c.bf16 %v587, %v586
      %v604 = vld [vmem:[%s2] sm:$0xf]
      %v605 = vld [vmem:[%s2 + $0x4] sm:$0xf]
      %v606 = vld [vmem:[%s2 + $0x8] sm:$0xf]
      %v607 = vld [vmem:[%s2 + $0xc] sm:$0xf]
      %v612 = vunpack.c.l.b16 %v604
      %v613 = vunpack.c.l.b16 %v605
      %v614 = vunpack.c.l.b16 %v606
      %v615 = vunpack.c.l.b16 %v607
      %v616 = vpack.c.b16 %v613, %v612
      %v617 = vpack.c.b16 %v615, %v614
      %vm620 = vcmask 261120
      %v622 = vsel %vm620, %v588, 0
      %v625 = vsel %vm620, %v589, 0
      %v628 = vsel %vm620, %v590, 0
      %v631 = vsel %vm620, %v591, 0
      %v634 = vsel %vm620, %v592, 0
      %v637 = vsel %vm620, %v593, 0
      %v640 = vsel %vm620, %v594, 0
      %v643 = vsel %vm620, %v595, 0
      %v646 = vsel %vm620, %v596, 0
      %v649 = vsel %vm620, %v597, 0
      %v652 = vsel %vm620, %v598, 0
      %v655 = vsel %vm620, %v599, 0
      %v658 = vsel %vm620, %v600, 0
      %v661 = vsel %vm620, %v601, 0
      %v664 = vsel %vm620, %v602, 0
      %v667 = vsel %vm620, %v603, 0
      %669 = vmatprep.subr.bf16.mxu0 0
      %670 = vmatpush1.bf16.msra.mxu0 %v616
      %671 = vmatprep.subr.bf16.mxu0 0
      %672 = vmatpush1.bf16.msra.mxu0 %v617
      %673 = vmatprep.subr.bf16.mxu0 0
      %674 = vmatpush1.bf16.msra.mxu0 0
      %675 = vmatprep.subr.bf16.mxu0 0
      %676 = vmatpush1.bf16.msra.mxu0 0
      %677 = vmatprep.subr.bf16.mxu0 0
      %678 = vmatpush1.bf16.msra.mxu0 0
      %679 = vmatprep.subr.bf16.mxu0 0
      %680 = vmatpush1.bf16.msra.mxu0 0
      %681 = vmatprep.subr.bf16.mxu0 0
      %682 = vmatpush1.bf16.msra.mxu0 0
      %683 = vmatprep.subr.bf16.mxu0 0
      %684 = vmatpush1.bf16.msra.mxu0 0
      %685 = vmatprep.subr.bf16.mxu0 0
      %686 = vmatpush1.bf16.msra.mxu0 0
      %687 = vmatprep.subr.bf16.mxu0 0
      %688 = vmatpush1.bf16.msra.mxu0 0
      %689 = vmatprep.subr.bf16.mxu0 0
      %690 = vmatpush1.bf16.msra.mxu0 0
      %691 = vmatprep.subr.bf16.mxu0 0
      %692 = vmatpush1.bf16.msra.mxu0 0
      %693 = vmatprep.subr.bf16.mxu0 0
      %694 = vmatpush1.bf16.msra.mxu0 0
      %695 = vmatprep.subr.bf16.mxu0 0
      %696 = vmatpush1.bf16.msra.mxu0 0
      %697 = vmatprep.subr.bf16.mxu0 0
      %698 = vmatpush1.bf16.msra.mxu0 0
      %699 = vmatprep.subr.bf16.mxu0 0
      %700 = vmatpush1.bf16.msra.mxu0 0
      %701 = vmatprep.mubr.bf16.mxu0 0
      %702 = vmatmul.mubr.bf16.gmra.mrb[0].mxu0 %v622
      %v703 = vpop.f32.mrb[0].mxu0
      %v704 = vadd.f32 0.0, %v703
      %v705 = vpop.f32.mrb[0].mxu0
      %v706 = vpop.f32.mrb[0].mxu0
      %v707 = vadd.f32 0.0, %v706
      %v708 = vpop.f32.mrb[0].mxu0
      %709 = vmatprep.mubr.bf16.mxu0 0
      %710 = vmatmul.mubr.bf16.gmra.mrb[0].mxu0 %v625
      %v711 = vpop.f32.mrb[0].mxu0
      %v712 = vadd.f32 0.0, %v711
      %v713 = vpop.f32.mrb[0].mxu0
      %v714 = vpop.f32.mrb[0].mxu0
      %v715 = vadd.f32 0.0, %v714
      %v716 = vpop.f32.mrb[0].mxu0
      %717 = vmatprep.mubr.bf16.mxu0 0
      %718 = vmatmul.mubr.bf16.gmra.mrb[0].mxu0 %v628
      %v719 = vpop.f32.mrb[0].mxu0
      %v720 = vadd.f32 0.0, %v719
      %v721 = vpop.f32.mrb[0].mxu0
      %v722 = vpop.f32.mrb[0].mxu0
      %v723 = vadd.f32 0.0, %v722
      %v724 = vpop.f32.mrb[0].mxu0
      %725 = vmatprep.mubr.bf16.mxu0 0
      %726 = vmatmul.mubr.bf16.gmra.mrb[0].mxu0 %v631
      %v727 = vpop.f32.mrb[0].mxu0
      %v728 = vadd.f32 0.0, %v727
      %v729 = vpop.f32.mrb[0].mxu0
      %v730 = vpop.f32.mrb[0].mxu0
      %v731 = vadd.f32 0.0, %v730
      %v732 = vpop.f32.mrb[0].mxu0
      %733 = vmatprep.mubr.bf16.mxu0 0
      %734 = vmatmul.mubr.bf16.gmra.mrb[0].mxu0 %v634
      %v735 = vpop.f32.mrb[0].mxu0
      %v736 = vadd.f32 0.0, %v735
      %v737 = vpop.f32.mrb[0].mxu0
      %v738 = vpop.f32.mrb[0].mxu0
      %v739 = vadd.f32 0.0, %v738
      %v740 = vpop.f32.mrb[0].mxu0
      %741 = vmatprep.mubr.bf16.mxu0 0
      %742 = vmatmul.mubr.bf16.gmra.mrb[0].mxu0 %v637
      %v743 = vpop.f32.mrb[0].mxu0
      %v744 = vadd.f32 0.0, %v743
      %v745 = vpop.f32.mrb[0].mxu0
      %v746 = vpop.f32.mrb[0].mxu0
      %v747 = vadd.f32 0.0, %v746
      %v748 = vpop.f32.mrb[0].mxu0
      %749 = vmatprep.mubr.bf16.mxu0 0
      %750 = vmatmul.mubr.bf16.gmra.mrb[0].mxu0 %v640
      %v751 = vpop.f32.mrb[0].mxu0
      %v752 = vadd.f32 0.0, %v751
      %v753 = vpop.f32.mrb[0].mxu0
      %v754 = vpop.f32.mrb[0].mxu0
      %v755 = vadd.f32 0.0, %v754
      %v756 = vpop.f32.mrb[0].mxu0
      %757 = vmatprep.mubr.bf16.mxu0 0
      %758 = vmatmul.mubr.bf16.gmra.mrb[0].mxu0 %v643
      %v759 = vpop.f32.mrb[0].mxu0
      %v760 = vadd.f32 0.0, %v759
      %v761 = vpop.f32.mrb[0].mxu0
      %v762 = vpop.f32.mrb[0].mxu0
      %v763 = vadd.f32 0.0, %v762
      %v764 = vpop.f32.mrb[0].mxu0
      %765 = vmatprep.mubr.bf16.mxu0 0
      %766 = vmatmul.mubr.bf16.gmra.mrb[0].mxu0 %v646
      %v767 = vpop.f32.mrb[0].mxu0
      %v768 = vadd.f32 0.0, %v767
      %v769 = vpop.f32.mrb[0].mxu0
      %v770 = vpop.f32.mrb[0].mxu0
      %v771 = vadd.f32 0.0, %v770
      %v772 = vpop.f32.mrb[0].mxu0
      %773 = vmatprep.mubr.bf16.mxu0 0
      %774 = vmatmul.mubr.bf16.gmra.mrb[0].mxu0 %v649
      %v775 = vpop.f32.mrb[0].mxu0
      %v776 = vadd.f32 0.0, %v775
      %v777 = vpop.f32.mrb[0].mxu0
      %v778 = vpop.f32.mrb[0].mxu0
      %v779 = vadd.f32 0.0, %v778
      %v780 = vpop.f32.mrb[0].mxu0
      %781 = vmatprep.mubr.bf16.mxu0 0
      %782 = vmatmul.mubr.bf16.gmra.mrb[0].mxu0 %v652
      %v783 = vpop.f32.mrb[0].mxu0
      %v784 = vadd.f32 0.0, %v783
      %v785 = vpop.f32.mrb[0].mxu0
      %v786 = vpop.f32.mrb[0].mxu0
      %v787 = vadd.f32 0.0, %v786
      %v788 = vpop.f32.mrb[0].mxu0
      %789 = vmatprep.mubr.bf16.mxu0 0
      %790 = vmatmul.mubr.bf16.gmra.mrb[0].mxu0 %v655
      %v791 = vpop.f32.mrb[0].mxu0
      %v792 = vadd.f32 0.0, %v791
      %v793 = vpop.f32.mrb[0].mxu0
      %v794 = vpop.f32.mrb[0].mxu0
      %v795 = vadd.f32 0.0, %v794
      %v796 = vpop.f32.mrb[0].mxu0
      %797 = vmatprep.mubr.bf16.mxu0 0
      %798 = vmatmul.mubr.bf16.gmra.mrb[0].mxu0 %v658
      %v799 = vpop.f32.mrb[0].mxu0
      %v800 = vadd.f32 0.0, %v799
      %v801 = vpop.f32.mrb[0].mxu0
      %v802 = vpop.f32.mrb[0].mxu0
      %v803 = vadd.f32 0.0, %v802
      %v804 = vpop.f32.mrb[0].mxu0
      %805 = vmatprep.mubr.bf16.mxu0 0
      %806 = vmatmul.mubr.bf16.gmra.mrb[0].mxu0 %v661
      %v807 = vpop.f32.mrb[0].mxu0
      %v808 = vadd.f32 0.0, %v807
      %v809 = vpop.f32.mrb[0].mxu0
      %v810 = vpop.f32.mrb[0].mxu0
      %v811 = vadd.f32 0.0, %v810
      %v812 = vpop.f32.mrb[0].mxu0
      %813 = vmatprep.mubr.bf16.mxu0 0
      %814 = vmatmul.mubr.bf16.gmra.mrb[0].mxu0 %v664
      %v815 = vpop.f32.mrb[0].mxu0
      %v816 = vadd.f32 0.0, %v815
      %v817 = vpop.f32.mrb[0].mxu0
      %v818 = vpop.f32.mrb[0].mxu0
      %v819 = vadd.f32 0.0, %v818
      %v820 = vpop.f32.mrb[0].mxu0
      %821 = vmatprep.mubr.bf16.mxu0 0
      %822 = vmatmul.mubr.bf16.gmra.mrb[0].mxu0 %v667
      %v823 = vpop.f32.mrb[0].mxu0
      %v824 = vadd.f32 0.0, %v823
      %v825 = vpop.f32.mrb[0].mxu0
      %v826 = vpop.f32.mrb[0].mxu0
      %v827 = vadd.f32 0.0, %v826
      %v828 = vpop.f32.mrb[0].mxu0
      %829 = vdwg.mxu0
      %v830 = vmax.f32 %v704, 0.0
      %v831 = vmax.f32 %v707, 0.0
      %v832 = vmax.f32 %v712, 0.0
      %v833 = vmax.f32 %v715, 0.0
      %v834 = vmax.f32 %v720, 0.0
      %v835 = vmax.f32 %v723, 0.0
      %v836 = vmax.f32 %v728, 0.0
      %v837 = vmax.f32 %v731, 0.0
      %v838 = vmax.f32 %v736, 0.0
      %v839 = vmax.f32 %v739, 0.0
      %v840 = vmax.f32 %v744, 0.0
      %v841 = vmax.f32 %v747, 0.0
      %v842 = vmax.f32 %v752, 0.0
      %v843 = vmax.f32 %v755, 0.0
      %v844 = vmax.f32 %v760, 0.0
      %v845 = vmax.f32 %v763, 0.0
      %v846 = vmax.f32 %v768, 0.0
      %v847 = vmax.f32 %v771, 0.0
      %v848 = vmax.f32 %v776, 0.0
      %v849 = vmax.f32 %v779, 0.0
      %v850 = vmax.f32 %v784, 0.0
      %v851 = vmax.f32 %v787, 0.0
      %v852 = vmax.f32 %v792, 0.0
      %v853 = vmax.f32 %v795, 0.0
      %v854 = vmax.f32 %v800, 0.0
      %v855 = vmax.f32 %v803, 0.0
      %v856 = vmax.f32 %v808, 0.0
      %v857 = vmax.f32 %v811, 0.0
      %v858 = vmax.f32 %v816, 0.0
      %v859 = vmax.f32 %v819, 0.0
      %v860 = vmax.f32 %v824, 0.0
      %v861 = vmax.f32 %v827, 0.0
      %v862 = vpack.c.bf16 %v831, %v830
      %v863 = vpack.c.bf16 %v833, %v832
      %v864 = vpack.c.bf16 %v835, %v834
      %v865 = vpack.c.bf16 %v837, %v836
      %v866 = vpack.c.bf16 %v839, %v838
      %v867 = vpack.c.bf16 %v841, %v840
      %v868 = vpack.c.bf16 %v843, %v842
      %v869 = vpack.c.bf16 %v845, %v844
      %v870 = vpack.c.bf16 %v847, %v846
      %v871 = vpack.c.bf16 %v849, %v848
      %v872 = vpack.c.bf16 %v851, %v850
      %v873 = vpack.c.bf16 %v853, %v852
      %v874 = vpack.c.bf16 %v855, %v854
      %v875 = vpack.c.bf16 %v857, %v856
      %v876 = vpack.c.bf16 %v859, %v858
      %v877 = vpack.c.bf16 %v861, %v860
      %v878 = vld [vmem:[%s3] sm:$0xf]
      %v879 = vld [vmem:[%s3 + $0x4] sm:$0xf]
      %v880 = vld [vmem:[%s3 + $0x8] sm:$0xf]
      %v881 = vld [vmem:[%s3 + $0xc] sm:$0xf]
      %v886 = vunpack.c.l.b16 %v878
      %v887 = vunpack.c.l.b16 %v879
      %v888 = vunpack.c.l.b16 %v880
      %v889 = vunpack.c.l.b16 %v881
      %v890 = vpack.c.b16 %v887, %v886
      %v891 = vpack.c.b16 %v889, %v888
      %v895 = vsel %vm620, %v862, 0
      %v898 = vsel %vm620, %v863, 0
      %v901 = vsel %vm620, %v864, 0
      %v904 = vsel %vm620, %v865, 0
      %v907 = vsel %vm620, %v866, 0
      %v910 = vsel %vm620, %v867, 0
      %v913 = vsel %vm620, %v868, 0
      %v916 = vsel %vm620, %v869, 0
      %v919 = vsel %vm620, %v870, 0
      %v922 = vsel %vm620, %v871, 0
      %v925 = vsel %vm620, %v872, 0
      %v928 = vsel %vm620, %v873, 0
      %v931 = vsel %vm620, %v874, 0
      %v934 = vsel %vm620, %v875, 0
      %v937 = vsel %vm620, %v876, 0
      %v940 = vsel %vm620, %v877, 0
      %942 = vmatprep.subr.bf16.mxu0 0
      %943 = vmatpush1.bf16.msra.mxu0 %v890
      %944 = vmatprep.subr.bf16.mxu0 0
      %945 = vmatpush1.bf16.msra.mxu0 %v891
      %946 = vmatprep.subr.bf16.mxu0 0
      %947 = vmatpush1.bf16.msra.mxu0 0
      %948 = vmatprep.subr.bf16.mxu0 0
      %949 = vmatpush1.bf16.msra.mxu0 0
      %950 = vmatprep.subr.bf16.mxu0 0
      %951 = vmatpush1.bf16.msra.mxu0 0
      %952 = vmatprep.subr.bf16.mxu0 0
      %953 = vmatpush1.bf16.msra.mxu0 0
      %954 = vmatprep.subr.bf16.mxu0 0
      %955 = vmatpush1.bf16.msra.mxu0 0
      %956 = vmatprep.subr.bf16.mxu0 0
      %957 = vmatpush1.bf16.msra.mxu0 0
      %958 = vmatprep.subr.bf16.mxu0 0
      %959 = vmatpush1.bf16.msra.mxu0 0
      %960 = vmatprep.subr.bf16.mxu0 0
      %961 = vmatpush1.bf16.msra.mxu0 0
      %962 = vmatprep.subr.bf16.mxu0 0
      %963 = vmatpush1.bf16.msra.mxu0 0
      %964 = vmatprep.subr.bf16.mxu0 0
      %965 = vmatpush1.bf16.msra.mxu0 0
      %966 = vmatprep.subr.bf16.mxu0 0
      %967 = vmatpush1.bf16.msra.mxu0 0
      %968 = vmatprep.subr.bf16.mxu0 0
      %969 = vmatpush1.bf16.msra.mxu0 0
      %970 = vmatprep.subr.bf16.mxu0 0
      %971 = vmatpush1.bf16.msra.mxu0 0
      %972 = vmatprep.subr.bf16.mxu0 0
      %973 = vmatpush1.bf16.msra.mxu0 0
      %974 = vmatprep.mubr.bf16.mxu0 0
      %975 = vmatmul.mubr.bf16.gmra.mrb[0].mxu0 %v895
      %v976 = vpop.f32.mrb[0].mxu0
      %v977 = vadd.f32 0.0, %v976
      %v978 = vpop.f32.mrb[0].mxu0
      %v979 = vpop.f32.mrb[0].mxu0
      %v980 = vadd.f32 0.0, %v979
      %v981 = vpop.f32.mrb[0].mxu0
      %982 = vmatprep.mubr.bf16.mxu0 0
      %983 = vmatmul.mubr.bf16.gmra.mrb[0].mxu0 %v898
      %v984 = vpop.f32.mrb[0].mxu0
      %v985 = vadd.f32 0.0, %v984
      %v986 = vpop.f32.mrb[0].mxu0
      %v987 = vpop.f32.mrb[0].mxu0
      %v988 = vadd.f32 0.0, %v987
      %v989 = vpop.f32.mrb[0].mxu0
      %990 = vmatprep.mubr.bf16.mxu0 0
      %991 = vmatmul.mubr.bf16.gmra.mrb[0].mxu0 %v901
      %v992 = vpop.f32.mrb[0].mxu0
      %v993 = vadd.f32 0.0, %v992
      %v994 = vpop.f32.mrb[0].mxu0
      %v995 = vpop.f32.mrb[0].mxu0
      %v996 = vadd.f32 0.0, %v995
      %v997 = vpop.f32.mrb[0].mxu0
      %998 = vmatprep.mubr.bf16.mxu0 0
      %999 = vmatmul.mubr.bf16.gmra.mrb[0].mxu0 %v904
      %v1000 = vpop.f32.mrb[0].mxu0
      %v1001 = vadd.f32 0.0, %v1000
      %v1002 = vpop.f32.mrb[0].mxu0
      %v1003 = vpop.f32.mrb[0].mxu0
      %v1004 = vadd.f32 0.0, %v1003
      %v1005 = vpop.f32.mrb[0].mxu0
      %1006 = vmatprep.mubr.bf16.mxu0 0
      %1007 = vmatmul.mubr.bf16.gmra.mrb[0].mxu0 %v907
      %v1008 = vpop.f32.mrb[0].mxu0
      %v1009 = vadd.f32 0.0, %v1008
      %v1010 = vpop.f32.mrb[0].mxu0
      %v1011 = vpop.f32.mrb[0].mxu0
      %v1012 = vadd.f32 0.0, %v1011
      %v1013 = vpop.f32.mrb[0].mxu0
      %1014 = vmatprep.mubr.bf16.mxu0 0
      %1015 = vmatmul.mubr.bf16.gmra.mrb[0].mxu0 %v910
      %v1016 = vpop.f32.mrb[0].mxu0
      %v1017 = vadd.f32 0.0, %v1016
      %v1018 = vpop.f32.mrb[0].mxu0
      %v1019 = vpop.f32.mrb[0].mxu0
      %v1020 = vadd.f32 0.0, %v1019
      %v1021 = vpop.f32.mrb[0].mxu0
      %1022 = vmatprep.mubr.bf16.mxu0 0
      %1023 = vmatmul.mubr.bf16.gmra.mrb[0].mxu0 %v913
      %v1024 = vpop.f32.mrb[0].mxu0
      %v1025 = vadd.f32 0.0, %v1024
      %v1026 = vpop.f32.mrb[0].mxu0
      %v1027 = vpop.f32.mrb[0].mxu0
      %v1028 = vadd.f32 0.0, %v1027
      %v1029 = vpop.f32.mrb[0].mxu0
      %1030 = vmatprep.mubr.bf16.mxu0 0
      %1031 = vmatmul.mubr.bf16.gmra.mrb[0].mxu0 %v916
      %v1032 = vpop.f32.mrb[0].mxu0
      %v1033 = vadd.f32 0.0, %v1032
      %v1034 = vpop.f32.mrb[0].mxu0
      %v1035 = vpop.f32.mrb[0].mxu0
      %v1036 = vadd.f32 0.0, %v1035
      %v1037 = vpop.f32.mrb[0].mxu0
      %1038 = vmatprep.mubr.bf16.mxu0 0
      %1039 = vmatmul.mubr.bf16.gmra.mrb[0].mxu0 %v919
      %v1040 = vpop.f32.mrb[0].mxu0
      %v1041 = vadd.f32 0.0, %v1040
      %v1042 = vpop.f32.mrb[0].mxu0
      %v1043 = vpop.f32.mrb[0].mxu0
      %v1044 = vadd.f32 0.0, %v1043
      %v1045 = vpop.f32.mrb[0].mxu0
      %1046 = vmatprep.mubr.bf16.mxu0 0
      %1047 = vmatmul.mubr.bf16.gmra.mrb[0].mxu0 %v922
      %v1048 = vpop.f32.mrb[0].mxu0
      %v1049 = vadd.f32 0.0, %v1048
      %v1050 = vpop.f32.mrb[0].mxu0
      %v1051 = vpop.f32.mrb[0].mxu0
      %v1052 = vadd.f32 0.0, %v1051
      %v1053 = vpop.f32.mrb[0].mxu0
      %1054 = vmatprep.mubr.bf16.mxu0 0
      %1055 = vmatmul.mubr.bf16.gmra.mrb[0].mxu0 %v925
      %v1056 = vpop.f32.mrb[0].mxu0
      %v1057 = vadd.f32 0.0, %v1056
      %v1058 = vpop.f32.mrb[0].mxu0
      %v1059 = vpop.f32.mrb[0].mxu0
      %v1060 = vadd.f32 0.0, %v1059
      %v1061 = vpop.f32.mrb[0].mxu0
      %1062 = vmatprep.mubr.bf16.mxu0 0
      %1063 = vmatmul.mubr.bf16.gmra.mrb[0].mxu0 %v928
      %v1064 = vpop.f32.mrb[0].mxu0
      %v1065 = vadd.f32 0.0, %v1064
      %v1066 = vpop.f32.mrb[0].mxu0
      %v1067 = vpop.f32.mrb[0].mxu0
      %v1068 = vadd.f32 0.0, %v1067
      %v1069 = vpop.f32.mrb[0].mxu0
      %1070 = vmatprep.mubr.bf16.mxu0 0
      %1071 = vmatmul.mubr.bf16.gmra.mrb[0].mxu0 %v931
      %v1072 = vpop.f32.mrb[0].mxu0
      %v1073 = vadd.f32 0.0, %v1072
      %v1074 = vpop.f32.mrb[0].mxu0
      %v1075 = vpop.f32.mrb[0].mxu0
      %v1076 = vadd.f32 0.0, %v1075
      %v1077 = vpop.f32.mrb[0].mxu0
      %1078 = vmatprep.mubr.bf16.mxu0 0
      %1079 = vmatmul.mubr.bf16.gmra.mrb[0].mxu0 %v934
      %v1080 = vpop.f32.mrb[0].mxu0
      %v1081 = vadd.f32 0.0, %v1080
      %v1082 = vpop.f32.mrb[0].mxu0
      %v1083 = vpop.f32.mrb[0].mxu0
      %v1084 = vadd.f32 0.0, %v1083
      %v1085 = vpop.f32.mrb[0].mxu0
      %1086 = vmatprep.mubr.bf16.mxu0 0
      %1087 = vmatmul.mubr.bf16.gmra.mrb[0].mxu0 %v937
      %v1088 = vpop.f32.mrb[0].mxu0
      %v1089 = vadd.f32 0.0, %v1088
      %v1090 = vpop.f32.mrb[0].mxu0
      %v1091 = vpop.f32.mrb[0].mxu0
      %v1092 = vadd.f32 0.0, %v1091
      %v1093 = vpop.f32.mrb[0].mxu0
      %1094 = vmatprep.mubr.bf16.mxu0 0
      %1095 = vmatmul.mubr.bf16.gmra.mrb[0].mxu0 %v940
      %v1096 = vpop.f32.mrb[0].mxu0
      %v1097 = vadd.f32 0.0, %v1096
      %v1098 = vpop.f32.mrb[0].mxu0
      %v1099 = vpop.f32.mrb[0].mxu0
      %v1100 = vadd.f32 0.0, %v1099
      %v1101 = vpop.f32.mrb[0].mxu0
      %1102 = vdwg.mxu0
      %v1103 = vmax.f32 %v977, 0.0
      %v1104 = vmax.f32 %v980, 0.0
      %v1105 = vmax.f32 %v985, 0.0
      %v1106 = vmax.f32 %v988, 0.0
      %v1107 = vmax.f32 %v993, 0.0
      %v1108 = vmax.f32 %v996, 0.0
      %v1109 = vmax.f32 %v1001, 0.0
      %v1110 = vmax.f32 %v1004, 0.0
      %v1111 = vmax.f32 %v1009, 0.0
      %v1112 = vmax.f32 %v1012, 0.0
      %v1113 = vmax.f32 %v1017, 0.0
      %v1114 = vmax.f32 %v1020, 0.0
      %v1115 = vmax.f32 %v1025, 0.0
      %v1116 = vmax.f32 %v1028, 0.0
      %v1117 = vmax.f32 %v1033, 0.0
      %v1118 = vmax.f32 %v1036, 0.0
      %v1119 = vmax.f32 %v1041, 0.0
      %v1120 = vmax.f32 %v1044, 0.0
      %v1121 = vmax.f32 %v1049, 0.0
      %v1122 = vmax.f32 %v1052, 0.0
      %v1123 = vmax.f32 %v1057, 0.0
      %v1124 = vmax.f32 %v1060, 0.0
      %v1125 = vmax.f32 %v1065, 0.0
      %v1126 = vmax.f32 %v1068, 0.0
      %v1127 = vmax.f32 %v1073, 0.0
      %v1128 = vmax.f32 %v1076, 0.0
      %v1129 = vmax.f32 %v1081, 0.0
      %v1130 = vmax.f32 %v1084, 0.0
      %v1131 = vmax.f32 %v1089, 0.0
      %v1132 = vmax.f32 %v1092, 0.0
      %v1133 = vmax.f32 %v1097, 0.0
      %v1134 = vmax.f32 %v1100, 0.0
      %v1135 = vpack.c.bf16 %v1104, %v1103
      %v1136 = vpack.c.bf16 %v1106, %v1105
      %v1137 = vpack.c.bf16 %v1108, %v1107
      %v1138 = vpack.c.bf16 %v1110, %v1109
      %v1139 = vpack.c.bf16 %v1112, %v1111
      %v1140 = vpack.c.bf16 %v1114, %v1113
      %v1141 = vpack.c.bf16 %v1116, %v1115
      %v1142 = vpack.c.bf16 %v1118, %v1117
      %v1143 = vpack.c.bf16 %v1120, %v1119
      %v1144 = vpack.c.bf16 %v1122, %v1121
      %v1145 = vpack.c.bf16 %v1124, %v1123
      %v1146 = vpack.c.bf16 %v1126, %v1125
      %v1147 = vpack.c.bf16 %v1128, %v1127
      %v1148 = vpack.c.bf16 %v1130, %v1129
      %v1149 = vpack.c.bf16 %v1132, %v1131
      %v1150 = vpack.c.bf16 %v1134, %v1133
      %v1151 = vld [vmem:[%s4] sm:$0xf]
      %v1152 = vld [vmem:[%s4 + $0x4] sm:$0xf]
      %v1153 = vld [vmem:[%s4 + $0x8] sm:$0xf]
      %v1154 = vld [vmem:[%s4 + $0xc] sm:$0xf]
      %v1159 = vunpack.c.l.b16 %v1151
      %v1160 = vunpack.c.l.b16 %v1152
      %v1161 = vunpack.c.l.b16 %v1153
      %v1162 = vunpack.c.l.b16 %v1154
      %v1163 = vpack.c.b16 %v1160, %v1159
      %v1164 = vpack.c.b16 %v1162, %v1161
      %v1168 = vsel %vm620, %v1135, 0
      %v1171 = vsel %vm620, %v1136, 0
      %v1174 = vsel %vm620, %v1137, 0
      %v1177 = vsel %vm620, %v1138, 0
      %v1180 = vsel %vm620, %v1139, 0
      %v1183 = vsel %vm620, %v1140, 0
      %v1186 = vsel %vm620, %v1141, 0
      %v1189 = vsel %vm620, %v1142, 0
      %v1192 = vsel %vm620, %v1143, 0
      %v1195 = vsel %vm620, %v1144, 0
      %v1198 = vsel %vm620, %v1145, 0
      %v1201 = vsel %vm620, %v1146, 0
      %v1204 = vsel %vm620, %v1147, 0
      %v1207 = vsel %vm620, %v1148, 0
      %v1210 = vsel %vm620, %v1149, 0
      %v1213 = vsel %vm620, %v1150, 0
      %1215 = vmatprep.subr.bf16.mxu0 0
      %1216 = vmatpush1.bf16.msra.mxu0 %v1163
      %1217 = vmatprep.subr.bf16.mxu0 0
      %1218 = vmatpush1.bf16.msra.mxu0 %v1164
      %1219 = vmatprep.subr.bf16.mxu0 0
      %1220 = vmatpush1.bf16.msra.mxu0 0
      %1221 = vmatprep.subr.bf16.mxu0 0
      %1222 = vmatpush1.bf16.msra.mxu0 0
      %1223 = vmatprep.subr.bf16.mxu0 0
      %1224 = vmatpush1.bf16.msra.mxu0 0
      %1225 = vmatprep.subr.bf16.mxu0 0
      %1226 = vmatpush1.bf16.msra.mxu0 0
      %1227 = vmatprep.subr.bf16.mxu0 0
      %1228 = vmatpush1.bf16.msra.mxu0 0
      %1229 = vmatprep.subr.bf16.mxu0 0
      %1230 = vmatpush1.bf16.msra.mxu0 0
      %1231 = vmatprep.subr.bf16.mxu0 0
      %1232 = vmatpush1.bf16.msra.mxu0 0
      %1233 = vmatprep.subr.bf16.mxu0 0
      %1234 = vmatpush1.bf16.msra.mxu0 0
      %1235 = vmatprep.subr.bf16.mxu0 0
      %1236 = vmatpush1.bf16.msra.mxu0 0
      %1237 = vmatprep.subr.bf16.mxu0 0
      %1238 = vmatpush1.bf16.msra.mxu0 0
      %1239 = vmatprep.subr.bf16.mxu0 0
      %1240 = vmatpush1.bf16.msra.mxu0 0
      %1241 = vmatprep.subr.bf16.mxu0 0
      %1242 = vmatpush1.bf16.msra.mxu0 0
      %1243 = vmatprep.subr.bf16.mxu0 0
      %1244 = vmatpush1.bf16.msra.mxu0 0
      %1245 = vmatprep.subr.bf16.mxu0 0
      %1246 = vmatpush1.bf16.msra.mxu0 0
      %1247 = vmatprep.mubr.bf16.mxu0 0
      %1248 = vmatmul.mubr.bf16.gmra.mrb[0].mxu0 %v1168
      %v1249 = vpop.f32.mrb[0].mxu0
      %v1250 = vadd.f32 0.0, %v1249
      %v1251 = vpop.f32.mrb[0].mxu0
      %v1252 = vpop.f32.mrb[0].mxu0
      %v1253 = vadd.f32 0.0, %v1252
      %v1254 = vpop.f32.mrb[0].mxu0
      %1255 = vmatprep.mubr.bf16.mxu0 0
      %1256 = vmatmul.mubr.bf16.gmra.mrb[0].mxu0 %v1171
      %v1257 = vpop.f32.mrb[0].mxu0
      %v1258 = vadd.f32 0.0, %v1257
      %v1259 = vpop.f32.mrb[0].mxu0
      %v1260 = vpop.f32.mrb[0].mxu0
      %v1261 = vadd.f32 0.0, %v1260
      %v1262 = vpop.f32.mrb[0].mxu0
      %1263 = vmatprep.mubr.bf16.mxu0 0
      %1264 = vmatmul.mubr.bf16.gmra.mrb[0].mxu0 %v1174
      %v1265 = vpop.f32.mrb[0].mxu0
      %v1266 = vadd.f32 0.0, %v1265
      %v1267 = vpop.f32.mrb[0].mxu0
      %v1268 = vpop.f32.mrb[0].mxu0
      %v1269 = vadd.f32 0.0, %v1268
      %v1270 = vpop.f32.mrb[0].mxu0
      %1271 = vmatprep.mubr.bf16.mxu0 0
      %1272 = vmatmul.mubr.bf16.gmra.mrb[0].mxu0 %v1177
      %v1273 = vpop.f32.mrb[0].mxu0
      %v1274 = vadd.f32 0.0, %v1273
      %v1275 = vpop.f32.mrb[0].mxu0
      %v1276 = vpop.f32.mrb[0].mxu0
      %v1277 = vadd.f32 0.0, %v1276
      %v1278 = vpop.f32.mrb[0].mxu0
      %1279 = vmatprep.mubr.bf16.mxu0 0
      %1280 = vmatmul.mubr.bf16.gmra.mrb[0].mxu0 %v1180
      %v1281 = vpop.f32.mrb[0].mxu0
      %v1282 = vadd.f32 0.0, %v1281
      %v1283 = vpop.f32.mrb[0].mxu0
      %v1284 = vpop.f32.mrb[0].mxu0
      %v1285 = vadd.f32 0.0, %v1284
      %v1286 = vpop.f32.mrb[0].mxu0
      %1287 = vmatprep.mubr.bf16.mxu0 0
      %1288 = vmatmul.mubr.bf16.gmra.mrb[0].mxu0 %v1183
      %v1289 = vpop.f32.mrb[0].mxu0
      %v1290 = vadd.f32 0.0, %v1289
      %v1291 = vpop.f32.mrb[0].mxu0
      %v1292 = vpop.f32.mrb[0].mxu0
      %v1293 = vadd.f32 0.0, %v1292
      %v1294 = vpop.f32.mrb[0].mxu0
      %1295 = vmatprep.mubr.bf16.mxu0 0
      %1296 = vmatmul.mubr.bf16.gmra.mrb[0].mxu0 %v1186
      %v1297 = vpop.f32.mrb[0].mxu0
      %v1298 = vadd.f32 0.0, %v1297
      %v1299 = vpop.f32.mrb[0].mxu0
      %v1300 = vpop.f32.mrb[0].mxu0
      %v1301 = vadd.f32 0.0, %v1300
      %v1302 = vpop.f32.mrb[0].mxu0
      %1303 = vmatprep.mubr.bf16.mxu0 0
      %1304 = vmatmul.mubr.bf16.gmra.mrb[0].mxu0 %v1189
      %v1305 = vpop.f32.mrb[0].mxu0
      %v1306 = vadd.f32 0.0, %v1305
      %v1307 = vpop.f32.mrb[0].mxu0
      %v1308 = vpop.f32.mrb[0].mxu0
      %v1309 = vadd.f32 0.0, %v1308
      %v1310 = vpop.f32.mrb[0].mxu0
      %1311 = vmatprep.mubr.bf16.mxu0 0
      %1312 = vmatmul.mubr.bf16.gmra.mrb[0].mxu0 %v1192
      %v1313 = vpop.f32.mrb[0].mxu0
      %v1314 = vadd.f32 0.0, %v1313
      %v1315 = vpop.f32.mrb[0].mxu0
      %v1316 = vpop.f32.mrb[0].mxu0
      %v1317 = vadd.f32 0.0, %v1316
      %v1318 = vpop.f32.mrb[0].mxu0
      %1319 = vmatprep.mubr.bf16.mxu0 0
      %1320 = vmatmul.mubr.bf16.gmra.mrb[0].mxu0 %v1195
      %v1321 = vpop.f32.mrb[0].mxu0
      %v1322 = vadd.f32 0.0, %v1321
      %v1323 = vpop.f32.mrb[0].mxu0
      %v1324 = vpop.f32.mrb[0].mxu0
      %v1325 = vadd.f32 0.0, %v1324
      %v1326 = vpop.f32.mrb[0].mxu0
      %1327 = vmatprep.mubr.bf16.mxu0 0
      %1328 = vmatmul.mubr.bf16.gmra.mrb[0].mxu0 %v1198
      %v1329 = vpop.f32.mrb[0].mxu0
      %v1330 = vadd.f32 0.0, %v1329
      %v1331 = vpop.f32.mrb[0].mxu0
      %v1332 = vpop.f32.mrb[0].mxu0
      %v1333 = vadd.f32 0.0, %v1332
      %v1334 = vpop.f32.mrb[0].mxu0
      %1335 = vmatprep.mubr.bf16.mxu0 0
      %1336 = vmatmul.mubr.bf16.gmra.mrb[0].mxu0 %v1201
      %v1337 = vpop.f32.mrb[0].mxu0
      %v1338 = vadd.f32 0.0, %v1337
      %v1339 = vpop.f32.mrb[0].mxu0
      %v1340 = vpop.f32.mrb[0].mxu0
      %v1341 = vadd.f32 0.0, %v1340
      %v1342 = vpop.f32.mrb[0].mxu0
      %1343 = vmatprep.mubr.bf16.mxu0 0
      %1344 = vmatmul.mubr.bf16.gmra.mrb[0].mxu0 %v1204
      %v1345 = vpop.f32.mrb[0].mxu0
      %v1346 = vadd.f32 0.0, %v1345
      %v1347 = vpop.f32.mrb[0].mxu0
      %v1348 = vpop.f32.mrb[0].mxu0
      %v1349 = vadd.f32 0.0, %v1348
      %v1350 = vpop.f32.mrb[0].mxu0
      %1351 = vmatprep.mubr.bf16.mxu0 0
      %1352 = vmatmul.mubr.bf16.gmra.mrb[0].mxu0 %v1207
      %v1353 = vpop.f32.mrb[0].mxu0
      %v1354 = vadd.f32 0.0, %v1353
      %v1355 = vpop.f32.mrb[0].mxu0
      %v1356 = vpop.f32.mrb[0].mxu0
      %v1357 = vadd.f32 0.0, %v1356
      %v1358 = vpop.f32.mrb[0].mxu0
      %1359 = vmatprep.mubr.bf16.mxu0 0
      %1360 = vmatmul.mubr.bf16.gmra.mrb[0].mxu0 %v1210
      %v1361 = vpop.f32.mrb[0].mxu0
      %v1362 = vadd.f32 0.0, %v1361
      %v1363 = vpop.f32.mrb[0].mxu0
      %v1364 = vpop.f32.mrb[0].mxu0
      %v1365 = vadd.f32 0.0, %v1364
      %v1366 = vpop.f32.mrb[0].mxu0
      %1367 = vmatprep.mubr.bf16.mxu0 0
      %1368 = vmatmul.mubr.bf16.gmra.mrb[0].mxu0 %v1213
      %v1369 = vpop.f32.mrb[0].mxu0
      %v1370 = vadd.f32 0.0, %v1369
      %v1371 = vpop.f32.mrb[0].mxu0
      %v1372 = vpop.f32.mrb[0].mxu0
      %v1373 = vadd.f32 0.0, %v1372
      %v1374 = vpop.f32.mrb[0].mxu0
      %1375 = vdwg.mxu0
      %v1376 = vmul.f32 %v1250, %v1250
      %v1377 = vmul.f32 %v1253, %v1253
      %v1378 = vmul.f32 %v1258, %v1258
      %v1379 = vmul.f32 %v1261, %v1261
      %v1380 = vmul.f32 %v1266, %v1266
      %v1381 = vmul.f32 %v1269, %v1269
      %v1382 = vmul.f32 %v1274, %v1274
      %v1383 = vmul.f32 %v1277, %v1277
      %v1384 = vmul.f32 %v1282, %v1282
      %v1385 = vmul.f32 %v1285, %v1285
      %v1386 = vmul.f32 %v1290, %v1290
      %v1387 = vmul.f32 %v1293, %v1293
      %v1388 = vmul.f32 %v1298, %v1298
      %v1389 = vmul.f32 %v1301, %v1301
      %v1390 = vmul.f32 %v1306, %v1306
      %v1391 = vmul.f32 %v1309, %v1309
      %v1392 = vmul.f32 %v1314, %v1314
      %v1393 = vmul.f32 %v1317, %v1317
      %v1394 = vmul.f32 %v1322, %v1322
      %v1395 = vmul.f32 %v1325, %v1325
      %v1396 = vmul.f32 %v1330, %v1330
      %v1397 = vmul.f32 %v1333, %v1333
      %v1398 = vmul.f32 %v1338, %v1338
      %v1399 = vmul.f32 %v1341, %v1341
      %v1400 = vmul.f32 %v1346, %v1346
      %v1401 = vmul.f32 %v1349, %v1349
      %v1402 = vmul.f32 %v1354, %v1354
      %v1403 = vmul.f32 %v1357, %v1357
      %v1404 = vmul.f32 %v1362, %v1362
      %v1405 = vmul.f32 %v1365, %v1365
      %v1406 = vmul.f32 %v1370, %v1370
      %v1407 = vmul.f32 %v1373, %v1373
      %v1408 = vadd.f32 %v1376, %v1377
      %v1409 = vadd.f32 %v1408, %v1378
      %v1410 = vadd.f32 %v1409, %v1379
      %v1411 = vadd.f32 %v1410, %v1380
      %v1412 = vadd.f32 %v1411, %v1381
      %v1413 = vadd.f32 %v1412, %v1382
      %v1414 = vadd.f32 %v1413, %v1383
      %v1415 = vadd.f32 %v1414, %v1384
      %v1416 = vadd.f32 %v1415, %v1385
      %v1417 = vadd.f32 %v1416, %v1386
      %v1418 = vadd.f32 %v1417, %v1387
      %v1419 = vadd.f32 %v1418, %v1388
      %v1420 = vadd.f32 %v1419, %v1389
      %v1421 = vadd.f32 %v1420, %v1390
      %v1422 = vadd.f32 %v1421, %v1391
      %v1423 = vadd.f32 %v1422, %v1392
      %v1424 = vadd.f32 %v1423, %v1393
      %v1425 = vadd.f32 %v1424, %v1394
      %v1426 = vadd.f32 %v1425, %v1395
      %v1427 = vadd.f32 %v1426, %v1396
      %v1428 = vadd.f32 %v1427, %v1397
      %v1429 = vadd.f32 %v1428, %v1398
      %v1430 = vadd.f32 %v1429, %v1399
      %v1431 = vadd.f32 %v1430, %v1400
      %v1432 = vadd.f32 %v1431, %v1401
      %v1433 = vadd.f32 %v1432, %v1402
      %v1434 = vadd.f32 %v1433, %v1403
      %v1435 = vadd.f32 %v1434, %v1404
      %v1436 = vadd.f32 %v1435, %v1405
      %v1437 = vadd.f32 %v1436, %v1406
      %v1438 = vadd.f32 %v1437, %v1407
      %v1439 = vrot.slane %v1438, 4
      %v1440 = vadd.f32 %v1438, %v1439
      %v1441 = vrot.slane %v1440, 2
      %v1442 = vadd.f32 %v1440, %v1441
      %v1443 = vrot.slane %v1442, 1
      %v1444 = vadd.f32 %v1442, %v1443
      %1445 = vst [vmem:[%s224] sm:$0xff] %v1444
      %p1446 = scmp.lt.s32.totalorder %s16, 1
      %s1447 = scalar_select %p1446, %s16, 1
      %s1448 = smul.addr %s1447, 8
      %s1449 = scalar_lea.vmem %s5, %s1448
      // Predicated region
      $region41: #{detection_forward.1} parent=39 // pred_check
        %p1450 = pneg %p144
      $region42: #{detection_forward.1} parent=39 // pred_check_branch
        %1452 = sbr.rel (%p1450) target = $region44
      $region43: #{detection_forward.1} parent=39 // pred_region
        _
      $region44: #{detection_forward.1} parent=39 // pred_fallthru
        _
    $region40: #{detection_forward.1} parent=5 // pred_fallthru
      _
    %p1453 = scmp.le.s32.totalorder 2, %s11
    // Predicated region
    $region45: #{detection_forward.1} parent=5 // pred_check
      %p1454 = pneg %p1453
    $region46: #{detection_forward.1} parent=5 // pred_check_branch
      %1456 = sbr.rel (%p1454) target = $region48
    $region47: #{detection_forward.1} parent=5 // pred_region
      %s1457 = ssub.s32 %s11, 2
      // Predicated region
      $region49: #{detection_forward.1} parent=47 // pred_check
        %p1458 = pneg %p150
      $region50: #{detection_forward.1} parent=47 // pred_check_branch
        %1460 = sbr.rel (%p1458) target = $region52
      $region51: #{detection_forward.1} parent=47 // pred_region
        %p1461 = scmp.lt.s32.totalorder %s17, 1
        %s1462 = scalar_select %p1461, %s17, 1
        %s1463 = smul.addr %s1462, 8
        %s1464 = scalar_lea.vmem %s5, %s1463
      $region52: #{detection_forward.1} parent=47 // pred_fallthru
        _
    $region48: #{detection_forward.1} parent=5 // pred_fallthru
      _
  $region6: #{detection_forward.1} parent=0 // loop_footer
    %s15 = sadd.s32 1, %s11
  $region7: #{detection_forward.1} parent=0 // loop_footer_branch
    %10 = sbr.rel target = $region3
  $region8: #{detection_forward.1} parent=0 // loop_exit
    _

</llo_original>
